<compile_context>
chip_gen: v7x
topology: tpu7x:2x2x1
jax: 0.10.0
libtpu: 0.0.40
codegen_flags: <defaults>
</compile_context>

<pallas_src>
import jax
import jax.numpy as jnp
from jax.experimental import pallas as pl
from jax.experimental.pallas import tpu as pltpu

# ---------------------------------------------------------------------------
# Model dimensions (logical) and TPU-friendly padded dimensions
# ---------------------------------------------------------------------------
IN_FEATS = 6      # ml_prob, ml_prob_delta, 4x *_WIN_PERC
HIDDEN = 32
OUT_CLASSES = 2   # CrossEntropy over WIN in {0, 1}

LANE_IN = 8       # x feature dim padded 6 -> 8 (full-extent last dim; no 128-lane waste)
LANE_HID = 128    # hidden dim padded 32 -> 128 (weights resident; lane-dense MXU tiles)
LANE_OUT = 8      # output dim padded 2 -> 8 (narrow writeback; slice [:, :2] afterwards)
TILE_B = 1024     # batch rows per grid step (well under v7x's 64 MiB VMEM, double-buffered)


def _round_up(n, m):
    return ((n + m - 1) // m) * m


def _pad2d(a, rows, cols):
    a = jnp.asarray(a, jnp.float32)
    return jnp.pad(a, ((0, rows - a.shape[0]), (0, cols - a.shape[1])))


# ---------------------------------------------------------------------------
# Fused MLP kernel: out = relu(relu(x@W1+b1)@W2+b2)@W3 + b3
# x / weights in bf16, MXU accumulation + biases in f32.
# ---------------------------------------------------------------------------
def mlp_kernel(x_ref, w1_ref, b1_ref, w2_ref, b2_ref, w3_ref, b3_ref, o_ref):
    x = x_ref[...]                                                      # (TILE_B, 8) bf16
    h1 = jnp.dot(x, w1_ref[...], preferred_element_type=jnp.float32) + b1_ref[...]
    h1 = jnp.maximum(h1, 0.0).astype(jnp.bfloat16)                      # (TILE_B, 128)
    h2 = jnp.dot(h1, w2_ref[...], preferred_element_type=jnp.float32) + b2_ref[...]
    h2 = jnp.maximum(h2, 0.0).astype(jnp.bfloat16)                      # (TILE_B, 128)
    o_ref[...] = jnp.dot(h2, w3_ref[...], preferred_element_type=jnp.float32) + b3_ref[...]


# ---------------------------------------------------------------------------
# One-time parameter prep (hoisted out of the forward hot path)
# ---------------------------------------------------------------------------
def prepare_params(params):
    """Pad + cast parameters once.  Zero padding keeps padded lanes exactly 0
    through the ReLUs, so real outputs are unaffected."""
    w1, b1, w2, b2, w3, b3 = params
    w1p = _pad2d(w1, LANE_IN, LANE_HID).astype(jnp.bfloat16)
    w2p = _pad2d(w2, LANE_HID, LANE_HID).astype(jnp.bfloat16)
    w3p = _pad2d(w3, LANE_HID, LANE_OUT).astype(jnp.bfloat16)
    b1p = _pad2d(b1[None, :], 1, LANE_HID)   # biases stay f32
    b2p = _pad2d(b2[None, :], 1, LANE_HID)
    b3p = _pad2d(b3[None, :], 1, LANE_OUT)
    return (w1p, b1p, w2p, b2p, w3p, b3p)


def neural_network_forward(x, padded_params):
    """Forward of NeuralNetwork.stack via a single fused, batch-tiled Pallas kernel.

    x: (B, IN_FEATS) float32.  padded_params: output of prepare_params().
    Returns (B, OUT_CLASSES) float32 logits.
    """
    w1p, b1p, w2p, b2p, w3p, b3p = padded_params
    B = x.shape[0]
    tile_b = min(TILE_B, _round_up(B, 8))
    b_pad = _round_up(B, tile_b)

    # Only batch + 6->8 feature padding; dominant x stream cast to bf16.
    xp = jnp.pad(x.astype(jnp.float32),
                 ((0, b_pad - B), (0, LANE_IN - IN_FEATS))).astype(jnp.bfloat16)

    const = lambda i: (0, 0)        # resident weights/biases: same block every step
    out = pl.pallas_call(
        mlp_kernel,
        out_shape=jax.ShapeDtypeStruct((b_pad, LANE_OUT), jnp.float32),
        grid=(b_pad // tile_b,),
        in_specs=[
            pl.BlockSpec((tile_b, LANE_IN), lambda i: (i, 0)),    # x: tiled over batch
            pl.BlockSpec((LANE_IN, LANE_HID), const),             # W1
            pl.BlockSpec((1, LANE_HID), const),                   # b1
            pl.BlockSpec((LANE_HID, LANE_HID), const),            # W2
            pl.BlockSpec((1, LANE_HID), const),                   # b2
            pl.BlockSpec((LANE_HID, LANE_OUT), const),            # W3
            pl.BlockSpec((1, LANE_OUT), const),                   # b3
        ],
        out_specs=pl.BlockSpec((tile_b, LANE_OUT), lambda i: (i, 0)),
        compiler_params=pltpu.CompilerParams(
            dimension_semantics=("parallel",)),                   # v7x: 2 TCs split batch
    )(xp, w1p, b1p, w2p, b2p, w3p, b3p)

    return out[:B, :OUT_CLASSES]


# ---------------------------------------------------------------------------
# Deterministic parameter init (PyTorch nn.Linear default: U(-1/sqrt(fan_in)))
# ---------------------------------------------------------------------------
def init_params(key):
    def linear(key, fan_in, fan_out):
        kw, kb = jax.random.split(key)
        bound = 1.0 / jnp.sqrt(float(fan_in))
        w = jax.random.uniform(kw, (fan_in, fan_out), jnp.float32, -bound, bound)
        b = jax.random.uniform(kb, (fan_out,), jnp.float32, -bound, bound)
        return w, b

    k1, k2, k3 = jax.random.split(key, 3)
    w1, b1 = linear(k1, IN_FEATS, HIDDEN)
    w2, b2 = linear(k2, HIDDEN, HIDDEN)
    w3, b3 = linear(k3, HIDDEN, OUT_CLASSES)
    return (w1, b1, w2, b2, w3, b3)


# ---------------------------------------------------------------------------
# References: (a) exact-dtype match of the kernel math, (b) original f32 module
# ---------------------------------------------------------------------------
def reference_forward_matched(x, padded_params):
    w1p, b1p, w2p, b2p, w3p, b3p = padded_params
    xb = jnp.pad(x, ((0, 0), (0, LANE_IN - IN_FEATS))).astype(jnp.bfloat16)
    h1 = jnp.maximum(jnp.dot(xb, w1p, preferred_element_type=jnp.float32) + b1p, 0.0)
    h1 = h1.astype(jnp.bfloat16)
    h2 = jnp.maximum(jnp.dot(h1, w2p, preferred_element_type=jnp.float32) + b2p, 0.0)
    h2 = h2.astype(jnp.bfloat16)
    out = jnp.dot(h2, w3p, preferred_element_type=jnp.float32) + b3p
    return out[:, :OUT_CLASSES]


def reference_forward_f32(x, params):
    w1, b1, w2, b2, w3, b3 = params
    h1 = jnp.maximum(x @ w1 + b1, 0.0)
    h2 = jnp.maximum(h1 @ w2 + b2, 0.0)
    return h2 @ w3 + b3


if __name__ == "__main__":
    key = jax.random.PRNGKey(0)
    kx, kx2, kp = jax.random.split(key, 3)

    params = init_params(kp)
    padded_params = prepare_params(params)      # hoisted, done once
    fwd = jax.jit(neural_network_forward)

    # Primary check at the module's default batch_size = 200.
    batch = 200
    x = jax.random.normal(kx, (batch, IN_FEATS), jnp.float32)
    logits = jax.block_until_ready(fwd(x, padded_params))
    assert logits.shape == (batch, OUT_CLASSES)

    ref_match = reference_forward_matched(x, padded_params)
    assert jnp.allclose(logits, ref_match, atol=1e-4, rtol=1e-4), \
        "mismatch vs dtype-matched JAX reference"

    # Loose sanity check vs the original f32 module semantics (bf16 operand quantization).
    ref_f32 = reference_forward_f32(x, params)
    assert jnp.allclose(logits, ref_f32, atol=3e-1, rtol=1e-1), \
        "mismatch vs f32 reference beyond bf16 tolerance"

    # Second run exercising the multi-step batch grid (grid=(3,), padded tail tile).
    batch2 = 2500
    x2 = jax.random.normal(kx2, (batch2, IN_FEATS), jnp.float32)
    logits2 = jax.block_until_ready(fwd(x2, padded_params))
    assert logits2.shape == (batch2, OUT_CLASSES)
    ref2 = reference_forward_matched(x2, padded_params)
    assert jnp.allclose(logits2, ref2, atol=1e-4, rtol=1e-4), \
        "mismatch vs reference on multi-tile grid"

    print("KERNEL_OK")
</pallas_src>

<mosaic_0001>
module attributes {stable_mosaic.version = 11 : i64} {
  func.func @mlp_kernel(%arg0: i32, %arg1: memref<200x8xbf16, #tpu.memory_space<vmem>>, %arg2: memref<8x128xbf16, #tpu.memory_space<vmem>>, %arg3: memref<1x128xf32, #tpu.memory_space<vmem>>, %arg4: memref<128x128xbf16, #tpu.memory_space<vmem>>, %arg5: memref<1x128xf32, #tpu.memory_space<vmem>>, %arg6: memref<128x8xbf16, #tpu.memory_space<vmem>>, %arg7: memref<1x8xf32, #tpu.memory_space<vmem>>, %arg8: memref<200x8xf32, #tpu.memory_space<vmem>>) attributes {dimension_semantics = [#tpu.dimension_semantics<parallel>], iteration_bounds = array<i64: 1>, scalar_prefetch = 0 : i64, scratch_operands = 0 : i64, tpu.core_type = #tpu.core_type<tc>, window_params = [{transform_indices = @transform_0, window_bounds = array<i64: 200, 8>}, {pipeline_mode = #tpu.pipeline_mode<synchronous>, transform_indices = @transform_1, window_bounds = array<i64: 8, 128>}, {pipeline_mode = #tpu.pipeline_mode<synchronous>, transform_indices = @transform_2, window_bounds = array<i64: 1, 128>}, {pipeline_mode = #tpu.pipeline_mode<synchronous>, transform_indices = @transform_3, window_bounds = array<i64: 128, 128>}, {pipeline_mode = #tpu.pipeline_mode<synchronous>, transform_indices = @transform_4, window_bounds = array<i64: 1, 128>}, {pipeline_mode = #tpu.pipeline_mode<synchronous>, transform_indices = @transform_5, window_bounds = array<i64: 128, 8>}, {pipeline_mode = #tpu.pipeline_mode<synchronous>, transform_indices = @transform_6, window_bounds = array<i64: 1, 8>}, {transform_indices = @transform_7, window_bounds = array<i64: 200, 8>}]} {
    %c0 = arith.constant 0 : index
    %c0_0 = arith.constant 0 : index
    %0 = vector.load %arg1[%c0, %c0_0] : memref<200x8xbf16, #tpu.memory_space<vmem>>, vector<200x8xbf16>
    %c0_1 = arith.constant 0 : index
    %c0_2 = arith.constant 0 : index
    %1 = vector.load %arg2[%c0_1, %c0_2] : memref<8x128xbf16, #tpu.memory_space<vmem>>, vector<8x128xbf16>
    %cst = arith.constant dense<0.000000e+00> : vector<200x128xf32>
    %2 = tpu.matmul %0, %1, %cst {dimension_numbers = #tpu.dot_dimension_numbers<[1], [0], [0], [1], [0, 0, 1, 1], [], []>} : vector<200x8xbf16>, vector<8x128xbf16>, vector<200x128xf32> -> vector<200x128xf32>
    %c0_3 = arith.constant 0 : index
    %c0_4 = arith.constant 0 : index
    %3 = vector.load %arg3[%c0_3, %c0_4] : memref<1x128xf32, #tpu.memory_space<vmem>>, vector<1x128xf32>
    %4 = vector.broadcast %3 : vector<1x128xf32> to vector<200x128xf32>
    %5 = arith.addf %2, %4 : vector<200x128xf32>
    %cst_5 = arith.constant 0.000000e+00 : f32
    %6 = vector.broadcast %cst_5 : f32 to vector<200x128xf32>
    %7 = arith.maximumf %5, %6 : vector<200x128xf32>
    %8 = arith.truncf %7 : vector<200x128xf32> to vector<200x128xbf16>
    %c0_6 = arith.constant 0 : index
    %c0_7 = arith.constant 0 : index
    %9 = vector.load %arg4[%c0_6, %c0_7] : memref<128x128xbf16, #tpu.memory_space<vmem>>, vector<128x128xbf16>
    %cst_8 = arith.constant dense<0.000000e+00> : vector<200x128xf32>
    %10 = tpu.matmul %8, %9, %cst_8 {dimension_numbers = #tpu.dot_dimension_numbers<[1], [0], [0], [1], [0, 0, 1, 1], [], []>} : vector<200x128xbf16>, vector<128x128xbf16>, vector<200x128xf32> -> vector<200x128xf32>
    %c0_9 = arith.constant 0 : index
    %c0_10 = arith.constant 0 : index
    %11 = vector.load %arg5[%c0_9, %c0_10] : memref<1x128xf32, #tpu.memory_space<vmem>>, vector<1x128xf32>
    %12 = vector.broadcast %11 : vector<1x128xf32> to vector<200x128xf32>
    %13 = arith.addf %10, %12 : vector<200x128xf32>
    %cst_11 = arith.constant 0.000000e+00 : f32
    %14 = vector.broadcast %cst_11 : f32 to vector<200x128xf32>
    %15 = arith.maximumf %13, %14 : vector<200x128xf32>
    %16 = arith.truncf %15 : vector<200x128xf32> to vector<200x128xbf16>
    %c0_12 = arith.constant 0 : index
    %c0_13 = arith.constant 0 : index
    %17 = vector.load %arg6[%c0_12, %c0_13] : memref<128x8xbf16, #tpu.memory_space<vmem>>, vector<128x8xbf16>
    %cst_14 = arith.constant dense<0.000000e+00> : vector<200x8xf32>
    %18 = tpu.matmul %16, %17, %cst_14 {dimension_numbers = #tpu.dot_dimension_numbers<[1], [0], [0], [1], [0, 0, 1, 1], [], []>} : vector<200x128xbf16>, vector<128x8xbf16>, vector<200x8xf32> -> vector<200x8xf32>
    %c0_15 = arith.constant 0 : index
    %c0_16 = arith.constant 0 : index
    %19 = vector.load %arg7[%c0_15, %c0_16] : memref<1x8xf32, #tpu.memory_space<vmem>>, vector<1x8xf32>
    %20 = vector.broadcast %19 : vector<1x8xf32> to vector<200x8xf32>
    %21 = arith.addf %18, %20 : vector<200x8xf32>
    %c0_17 = arith.constant 0 : index
    %c0_18 = arith.constant 0 : index
    %22 = vector.load %arg8[%c0_17, %c0_18] : memref<200x8xf32, #tpu.memory_space<vmem>>, vector<200x8xf32>
    tpu.vector_store %arg8[%c0_17, %c0_18], %21 {strides = array<i32>} : memref<200x8xf32, #tpu.memory_space<vmem>>, vector<200x8xf32>,
    return
  }
  func.func @transform_0(%arg0: i32) -> (i32, i32) {
    %c0_i32 = arith.constant 0 : i32
    %c0_i32_0 = arith.constant 0 : i32
    return %arg0, %c0_i32 : i32, i32
  }
  func.func @transform_1(%arg0: i32) -> (i32, i32) {
    %c0_i32 = arith.constant 0 : i32
    %c0_i32_0 = arith.constant 0 : i32
    %c0_i32_1 = arith.constant 0 : i32
    return %c0_i32, %c0_i32_0 : i32, i32
  }
  func.func @transform_2(%arg0: i32) -> (i32, i32) {
    %c0_i32 = arith.constant 0 : i32
    %c0_i32_0 = arith.constant 0 : i32
    %c0_i32_1 = arith.constant 0 : i32
    return %c0_i32, %c0_i32_0 : i32, i32
  }
  func.func @transform_3(%arg0: i32) -> (i32, i32) {
    %c0_i32 = arith.constant 0 : i32
    %c0_i32_0 = arith.constant 0 : i32
    %c0_i32_1 = arith.constant 0 : i32
    return %c0_i32, %c0_i32_0 : i32, i32
  }
  func.func @transform_4(%arg0: i32) -> (i32, i32) {
    %c0_i32 = arith.constant 0 : i32
    %c0_i32_0 = arith.constant 0 : i32
    %c0_i32_1 = arith.constant 0 : i32
    return %c0_i32, %c0_i32_0 : i32, i32
  }
  func.func @transform_5(%arg0: i32) -> (i32, i32) {
    %c0_i32 = arith.constant 0 : i32
    %c0_i32_0 = arith.constant 0 : i32
    %c0_i32_1 = arith.constant 0 : i32
    return %c0_i32, %c0_i32_0 : i32, i32
  }
  func.func @transform_6(%arg0: i32) -> (i32, i32) {
    %c0_i32 = arith.constant 0 : i32
    %c0_i32_0 = arith.constant 0 : i32
    %c0_i32_1 = arith.constant 0 : i32
    return %c0_i32, %c0_i32_0 : i32, i32
  }
  func.func @transform_7(%arg0: i32) -> (i32, i32) {
    %c0_i32 = arith.constant 0 : i32
    %c0_i32_0 = arith.constant 0 : i32
    return %arg0, %c0_i32 : i32, i32
  }
}

</mosaic_0001>

<llo_original>
// kernel: neural_network_forward.1
$region0: #{neural_network_forward.1}
  #allocation0 [shape = 'u32[]', space=smem, size = 0x4, offset = 0x4, fixed_abs, tag = 'smem constant byte address 0x4 - core index']
  #allocation1 [shape = 'u32[144,128]{1,0:T(1,128)}', space=vmem, size = 0x12000, scoped, tag = 'internal scratch']
  %s0 = inlined_call_operand.vmem [shape: bf16[200,8], index: 0, kind: input, shape index: {}]
  %s1 = inlined_call_operand.vmem [shape: bf16[8,128], index: 1, kind: input, shape index: {}]
  %s2 = inlined_call_operand.vmem [shape: f32[1,128], index: 2, kind: input, shape index: {}]
  %s3 = inlined_call_operand.vmem [shape: bf16[128,128], index: 3, kind: input, shape index: {}]
  %s4 = inlined_call_operand.vmem [shape: f32[1,128], index: 4, kind: input, shape index: {}]
  %s5 = inlined_call_operand.vmem [shape: bf16[128,8], index: 5, kind: input, shape index: {}]
  %s6 = inlined_call_operand.vmem [shape: f32[1,8], index: 6, kind: input, shape index: {}]
  %s7 = inlined_call_operand.vmem [shape: f32[200,8], index: 7, kind: output, shape index: {}]
  %s8 = sld [smem:[#allocation0]]
  $region38: #{neural_network_forward.1} parent=0
    _
  %s10 = ssub.s32 1, %s8
  %s11 = scalar_select 0, %s10, %s8
  // Predicated region
  $region2: #{neural_network_forward.1} parent=0 // pred_check
    _
  $region3: #{neural_network_forward.1} parent=0 // pred_check_branch
    %13 = sbr.rel (0) target = $region5
  $region4: #{neural_network_forward.1} parent=0 // pred_region
    _
  $region5: #{neural_network_forward.1} parent=0 // pred_fallthru
    _
  // Predicated region
  $region6: #{neural_network_forward.1} parent=0 // pred_check
    _
  $region7: #{neural_network_forward.1} parent=0 // pred_check_branch
    %15 = sbr.rel (0) target = $region9
  $region8: #{neural_network_forward.1} parent=0 // pred_region
    _
  $region9: #{neural_network_forward.1} parent=0 // pred_fallthru
    _
  // Predicated region
  $region10: #{neural_network_forward.1} parent=0 // pred_check
    _
  $region11: #{neural_network_forward.1} parent=0 // pred_check_branch
    %17 = sbr.rel (0) target = $region13
  $region12: #{neural_network_forward.1} parent=0 // pred_region
    _
  $region13: #{neural_network_forward.1} parent=0 // pred_fallthru
    _
  // Predicated region
  $region14: #{neural_network_forward.1} parent=0 // pred_check
    _
  $region15: #{neural_network_forward.1} parent=0 // pred_check_branch
    %19 = sbr.rel (0) target = $region17
  $region16: #{neural_network_forward.1} parent=0 // pred_region
    _
  $region17: #{neural_network_forward.1} parent=0 // pred_fallthru
    _
  // Predicated region
  $region18: #{neural_network_forward.1} parent=0 // pred_check
    _
  $region19: #{neural_network_forward.1} parent=0 // pred_check_branch
    %21 = sbr.rel (0) target = $region21
  $region20: #{neural_network_forward.1} parent=0 // pred_region
    _
  $region21: #{neural_network_forward.1} parent=0 // pred_fallthru
    _
  // Predicated region
  $region22: #{neural_network_forward.1} parent=0 // pred_check
    _
  $region23: #{neural_network_forward.1} parent=0 // pred_check_branch
    %23 = sbr.rel (0) target = $region25
  $region24: #{neural_network_forward.1} parent=0 // pred_region
    _
  $region25: #{neural_network_forward.1} parent=0 // pred_fallthru
    _
  // Predicated region
  $region26: #{neural_network_forward.1} parent=0 // pred_check
    _
  $region27: #{neural_network_forward.1} parent=0 // pred_check_branch
    %25 = sbr.rel (0) target = $region29
  $region28: #{neural_network_forward.1} parent=0 // pred_region
    _
  $region29: #{neural_network_forward.1} parent=0 // pred_fallthru
    _
  %v27 = vld [vmem:[%s0] sm:$0xf]
  %v28 = vld [vmem:[%s0 + $0x4] sm:$0xf]
  %v29 = vld [vmem:[%s0 + $0x8] sm:$0xf]
  %v30 = vld [vmem:[%s0 + $0xc] sm:$0xf]
  %v31 = vld [vmem:[%s0 + $0x10] sm:$0xf]
  %v32 = vld [vmem:[%s0 + $0x14] sm:$0xf]
  %v33 = vld [vmem:[%s0 + $0x18] sm:$0xf]
  %v34 = vld [vmem:[%s0 + $0x1c] sm:$0xf]
  %v35 = vld [vmem:[%s0 + $0x20] sm:$0xf]
  %v36 = vld [vmem:[%s0 + $0x24] sm:$0xf]
  %v37 = vld [vmem:[%s0 + $0x28] sm:$0xf]
  %v38 = vld [vmem:[%s0 + $0x2c] sm:$0xf]
  %v39 = vld [vmem:[%s0 + $0x30] sm:$0xf]
  %v40 = vld [vmem:[%s0 + $0x34] sm:$0xf]
  %v41 = vld [vmem:[%s0 + $0x38] sm:$0xf]
  %v42 = vld [vmem:[%s0 + $0x3c] sm:$0xf]
  %v43 = vld [vmem:[%s0 + $0x40] sm:$0xf]
  %v44 = vld [vmem:[%s0 + $0x44] sm:$0xf]
  %v45 = vld [vmem:[%s0 + $0x48] sm:$0xf]
  %v46 = vld [vmem:[%s0 + $0x4c] sm:$0xf]
  %v47 = vld [vmem:[%s0 + $0x50] sm:$0xf]
  %v48 = vld [vmem:[%s0 + $0x54] sm:$0xf]
  %v49 = vld [vmem:[%s0 + $0x58] sm:$0xf]
  %v50 = vld [vmem:[%s0 + $0x5c] sm:$0xf]
  %v51 = vld [vmem:[%s0 + $0x60] sm:$0xf]
  %v52 = vld [vmem:[%s1] sm:$0xf]
  %v53 = vld [vmem:[%s2] sm:$0x1]
  %v55 = vlaneseq
  %v56 = vshrl.u32 %v55, 7
  %v57 = vsub.s32 0, %v56
  %v58 = vrot.slane %v53, %v57
  %v85 = vunpack.c.l.b16 %v27
  %v86 = vunpack.c.l.b16 %v28
  %v87 = vunpack.c.l.b16 %v29
  %v88 = vunpack.c.l.b16 %v30
  %v89 = vunpack.c.l.b16 %v31
  %v90 = vunpack.c.l.b16 %v32
  %v91 = vunpack.c.l.b16 %v33
  %v92 = vunpack.c.l.b16 %v34
  %v93 = vunpack.c.l.b16 %v35
  %v94 = vunpack.c.l.b16 %v36
  %v95 = vunpack.c.l.b16 %v37
  %v96 = vunpack.c.l.b16 %v38
  %v97 = vunpack.c.l.b16 %v39
  %v98 = vunpack.c.l.b16 %v40
  %v99 = vunpack.c.l.b16 %v41
  %v100 = vunpack.c.l.b16 %v42
  %v101 = vunpack.c.l.b16 %v43
  %v102 = vunpack.c.l.b16 %v44
  %v103 = vunpack.c.l.b16 %v45
  %v104 = vunpack.c.l.b16 %v46
  %v105 = vunpack.c.l.b16 %v47
  %v106 = vunpack.c.l.b16 %v48
  %v107 = vunpack.c.l.b16 %v49
  %v108 = vunpack.c.l.b16 %v50
  %v109 = vunpack.c.l.b16 %v51
  %v110 = vpack.c.b16 %v86, %v85
  %v111 = vpack.c.b16 %v88, %v87
  %v112 = vpack.c.b16 %v90, %v89
  %v113 = vpack.c.b16 %v92, %v91
  %v114 = vpack.c.b16 %v94, %v93
  %v115 = vpack.c.b16 %v96, %v95
  %v116 = vpack.c.b16 %v98, %v97
  %v117 = vpack.c.b16 %v100, %v99
  %v118 = vpack.c.b16 %v102, %v101
  %v119 = vpack.c.b16 %v104, %v103
  %v120 = vpack.c.b16 %v106, %v105
  %v121 = vpack.c.b16 %v108, %v107
  %v122 = vpack.c.b16 %v109, %v109
  %vm123 = vcmask 64512
  %v125 = vsel %vm123, %v110, 0
  %v128 = vsel %vm123, %v111, 0
  %v131 = vsel %vm123, %v112, 0
  %v134 = vsel %vm123, %v113, 0
  %v137 = vsel %vm123, %v114, 0
  %v140 = vsel %vm123, %v115, 0
  %v143 = vsel %vm123, %v116, 0
  %v146 = vsel %vm123, %v117, 0
  %v149 = vsel %vm123, %v118, 0
  %v152 = vsel %vm123, %v119, 0
  %v155 = vsel %vm123, %v120, 0
  %v158 = vsel %vm123, %v121, 0
  %v161 = vsel %vm123, %v122, 0
  %vm163 = vcmask 1043456
  %v165 = vsel %vm163, %v52, 0
  %167 = vmatprep.subr.bf16.mxu0 0
  %168 = vmatpush1.bf16.msra.mxu0 %v165
  %169 = vmatprep.subr.bf16.mxu0 0
  %170 = vmatpush1.bf16.msra.mxu0 0
  %171 = vmatprep.subr.bf16.mxu0 0
  %172 = vmatpush1.bf16.msra.mxu0 0
  %173 = vmatprep.subr.bf16.mxu0 0
  %174 = vmatpush1.bf16.msra.mxu0 0
  %175 = vmatprep.subr.bf16.mxu0 0
  %176 = vmatpush1.bf16.msra.mxu0 0
  %177 = vmatprep.subr.bf16.mxu0 0
  %178 = vmatpush1.bf16.msra.mxu0 0
  %179 = vmatprep.subr.bf16.mxu0 0
  %180 = vmatpush1.bf16.msra.mxu0 0
  %181 = vmatprep.subr.bf16.mxu0 0
  %182 = vmatpush1.bf16.msra.mxu0 0
  %183 = vmatprep.subr.bf16.mxu0 0
  %184 = vmatpush1.bf16.msra.mxu0 0
  %185 = vmatprep.subr.bf16.mxu0 0
  %186 = vmatpush1.bf16.msra.mxu0 0
  %187 = vmatprep.subr.bf16.mxu0 0
  %188 = vmatpush1.bf16.msra.mxu0 0
  %189 = vmatprep.subr.bf16.mxu0 0
  %190 = vmatpush1.bf16.msra.mxu0 0
  %191 = vmatprep.subr.bf16.mxu0 0
  %192 = vmatpush1.bf16.msra.mxu0 0
  %193 = vmatprep.subr.bf16.mxu0 0
  %194 = vmatpush1.bf16.msra.mxu0 0
  %195 = vmatprep.subr.bf16.mxu0 0
  %196 = vmatpush1.bf16.msra.mxu0 0
  %197 = vmatprep.subr.bf16.mxu0 0
  %198 = vmatpush1.bf16.msra.mxu0 0
  %199 = vmatprep.mubr.bf16.mxu0 0
  %200 = vmatmul.mubr.bf16.gmra.mrb[0].mxu0 %v125
  %v201 = vpop.f32.mrb[0].mxu0
  %v202 = vadd.f32 %v58, %v201
  %v203 = vpop.f32.mrb[0].mxu0
  %v204 = vpop.f32.mrb[0].mxu0
  %v205 = vadd.f32 %v58, %v204
  %v206 = vpop.f32.mrb[0].mxu0
  %207 = vmatprep.mubr.bf16.mxu0 0
  %208 = vmatmul.mubr.bf16.gmra.mrb[0].mxu0 %v128
  %v209 = vpop.f32.mrb[0].mxu0
  %v210 = vadd.f32 %v58, %v209
  %v211 = vpop.f32.mrb[0].mxu0
  %v212 = vpop.f32.mrb[0].mxu0
  %v213 = vadd.f32 %v58, %v212
  %v214 = vpop.f32.mrb[0].mxu0
  %215 = vmatprep.mubr.bf16.mxu0 0
  %216 = vmatmul.mubr.bf16.gmra.mrb[0].mxu0 %v131
  %v217 = vpop.f32.mrb[0].mxu0
  %v218 = vadd.f32 %v58, %v217
  %v219 = vpop.f32.mrb[0].mxu0
  %v220 = vpop.f32.mrb[0].mxu0
  %v221 = vadd.f32 %v58, %v220
  %v222 = vpop.f32.mrb[0].mxu0
  %223 = vmatprep.mubr.bf16.mxu0 0
  %224 = vmatmul.mubr.bf16.gmra.mrb[0].mxu0 %v134
  %v225 = vpop.f32.mrb[0].mxu0
  %v226 = vadd.f32 %v58, %v225
  %v227 = vpop.f32.mrb[0].mxu0
  %v228 = vpop.f32.mrb[0].mxu0
  %v229 = vadd.f32 %v58, %v228
  %v230 = vpop.f32.mrb[0].mxu0
  %231 = vmatprep.mubr.bf16.mxu0 0
  %232 = vmatmul.mubr.bf16.gmra.mrb[0].mxu0 %v137
  %v233 = vpop.f32.mrb[0].mxu0
  %v234 = vadd.f32 %v58, %v233
  %v235 = vpop.f32.mrb[0].mxu0
  %v236 = vpop.f32.mrb[0].mxu0
  %v237 = vadd.f32 %v58, %v236
  %v238 = vpop.f32.mrb[0].mxu0
  %239 = vmatprep.mubr.bf16.mxu0 0
  %240 = vmatmul.mubr.bf16.gmra.mrb[0].mxu0 %v140
  %v241 = vpop.f32.mrb[0].mxu0
  %v242 = vadd.f32 %v58, %v241
  %v243 = vpop.f32.mrb[0].mxu0
  %v244 = vpop.f32.mrb[0].mxu0
  %v245 = vadd.f32 %v58, %v244
  %v246 = vpop.f32.mrb[0].mxu0
  %247 = vmatprep.mubr.bf16.mxu0 0
  %248 = vmatmul.mubr.bf16.gmra.mrb[0].mxu0 %v143
  %v249 = vpop.f32.mrb[0].mxu0
  %v250 = vadd.f32 %v58, %v249
  %v251 = vpop.f32.mrb[0].mxu0
  %v252 = vpop.f32.mrb[0].mxu0
  %v253 = vadd.f32 %v58, %v252
  %v254 = vpop.f32.mrb[0].mxu0
  %255 = vmatprep.mubr.bf16.mxu0 0
  %256 = vmatmul.mubr.bf16.gmra.mrb[0].mxu0 %v146
  %v257 = vpop.f32.mrb[0].mxu0
  %v258 = vadd.f32 %v58, %v257
  %v259 = vpop.f32.mrb[0].mxu0
  %v260 = vpop.f32.mrb[0].mxu0
  %v261 = vadd.f32 %v58, %v260
  %v262 = vpop.f32.mrb[0].mxu0
  %263 = vmatprep.mubr.bf16.mxu0 0
  %264 = vmatmul.mubr.bf16.gmra.mrb[0].mxu0 %v149
  %v265 = vpop.f32.mrb[0].mxu0
  %v266 = vadd.f32 %v58, %v265
  %v267 = vpop.f32.mrb[0].mxu0
  %v268 = vpop.f32.mrb[0].mxu0
  %v269 = vadd.f32 %v58, %v268
  %v270 = vpop.f32.mrb[0].mxu0
  %271 = vmatprep.mubr.bf16.mxu0 0
  %272 = vmatmul.mubr.bf16.gmra.mrb[0].mxu0 %v152
  %v273 = vpop.f32.mrb[0].mxu0
  %v274 = vadd.f32 %v58, %v273
  %v275 = vpop.f32.mrb[0].mxu0
  %v276 = vpop.f32.mrb[0].mxu0
  %v277 = vadd.f32 %v58, %v276
  %v278 = vpop.f32.mrb[0].mxu0
  %279 = vmatprep.mubr.bf16.mxu0 0
  %280 = vmatmul.mubr.bf16.gmra.mrb[0].mxu0 %v155
  %v281 = vpop.f32.mrb[0].mxu0
  %v282 = vadd.f32 %v58, %v281
  %v283 = vpop.f32.mrb[0].mxu0
  %v284 = vpop.f32.mrb[0].mxu0
  %v285 = vadd.f32 %v58, %v284
  %v286 = vpop.f32.mrb[0].mxu0
  %287 = vmatprep.mubr.bf16.mxu0 0
  %288 = vmatmul.mubr.bf16.gmra.mrb[0].mxu0 %v158
  %v289 = vpop.f32.mrb[0].mxu0
  %v290 = vadd.f32 %v58, %v289
  %v291 = vpop.f32.mrb[0].mxu0
  %v292 = vpop.f32.mrb[0].mxu0
  %v293 = vadd.f32 %v58, %v292
  %v294 = vpop.f32.mrb[0].mxu0
  %295 = vmatprep.mubr.bf16.mxu0 0
  %296 = vmatmul.mubr.bf16.gmra.mrb[0].mxu0 %v161
  %v297 = vpop.f32.mrb[0].mxu0
  %v298 = vadd.f32 %v58, %v297
  %v299 = vpop.f32.mrb[0].mxu0
  %v300 = vpop.f32.mrb[0].mxu0
  %v301 = vpop.f32.mrb[0].mxu0
  %302 = vdwg.mxu0
  %v303 = vmax.f32 %v202, 0.0
  %v304 = vmax.f32 %v205, 0.0
  %v305 = vmax.f32 %v210, 0.0
  %v306 = vmax.f32 %v213, 0.0
  %v307 = vmax.f32 %v218, 0.0
  %v308 = vmax.f32 %v221, 0.0
  %v309 = vmax.f32 %v226, 0.0
  %v310 = vmax.f32 %v229, 0.0
  %v311 = vmax.f32 %v234, 0.0
  %v312 = vmax.f32 %v237, 0.0
  %v313 = vmax.f32 %v242, 0.0
  %v314 = vmax.f32 %v245, 0.0
  %v315 = vmax.f32 %v250, 0.0
  %v316 = vmax.f32 %v253, 0.0
  %v317 = vmax.f32 %v258, 0.0
  %v318 = vmax.f32 %v261, 0.0
  %v319 = vmax.f32 %v266, 0.0
  %v320 = vmax.f32 %v269, 0.0
  %v321 = vmax.f32 %v274, 0.0
  %v322 = vmax.f32 %v277, 0.0
  %v323 = vmax.f32 %v282, 0.0
  %v324 = vmax.f32 %v285, 0.0
  %v325 = vmax.f32 %v290, 0.0
  %v326 = vmax.f32 %v293, 0.0
  %v327 = vmax.f32 %v298, 0.0
  %v328 = vpack.c.bf16 %v304, %v303
  %v329 = vpack.c.bf16 %v306, %v305
  %v330 = vpack.c.bf16 %v308, %v307
  %v331 = vpack.c.bf16 %v310, %v309
  %v332 = vpack.c.bf16 %v312, %v311
  %v333 = vpack.c.bf16 %v314, %v313
  %v334 = vpack.c.bf16 %v316, %v315
  %v335 = vpack.c.bf16 %v318, %v317
  %v336 = vpack.c.bf16 %v320, %v319
  %v337 = vpack.c.bf16 %v322, %v321
  %v338 = vpack.c.bf16 %v324, %v323
  %v339 = vpack.c.bf16 %v326, %v325
  %v340 = vpack.c.bf16 %v327, %v327
  %v341 = vld [vmem:[%s3] sm:$0xf]
  %v342 = vld [vmem:[%s3 + $0x4] sm:$0xf]
  %v343 = vld [vmem:[%s3 + $0x8] sm:$0xf]
  %v344 = vld [vmem:[%s3 + $0xc] sm:$0xf]
  %v345 = vld [vmem:[%s3 + $0x10] sm:$0xf]
  %v346 = vld [vmem:[%s3 + $0x14] sm:$0xf]
  %v347 = vld [vmem:[%s3 + $0x18] sm:$0xf]
  %v348 = vld [vmem:[%s3 + $0x1c] sm:$0xf]
  %v349 = vld [vmem:[%s3 + $0x20] sm:$0xf]
  %v350 = vld [vmem:[%s3 + $0x24] sm:$0xf]
  %v351 = vld [vmem:[%s3 + $0x28] sm:$0xf]
  %v352 = vld [vmem:[%s3 + $0x2c] sm:$0xf]
  %v353 = vld [vmem:[%s3 + $0x30] sm:$0xf]
  %v354 = vld [vmem:[%s3 + $0x34] sm:$0xf]
  %v355 = vld [vmem:[%s3 + $0x38] sm:$0xf]
  %v356 = vld [vmem:[%s3 + $0x3c] sm:$0xf]
  %v357 = vld [vmem:[%s4] sm:$0x1]
  %v359 = vlaneseq
  %v360 = vshrl.u32 %v359, 7
  %v361 = vsub.s32 0, %v360
  %v362 = vrot.slane %v357, %v361
  %v380 = vunpack.c.l.b16 %v341
  %v381 = vunpack.c.l.b16 %v342
  %v382 = vunpack.c.l.b16 %v343
  %v383 = vunpack.c.l.b16 %v344
  %v384 = vunpack.c.l.b16 %v345
  %v385 = vunpack.c.l.b16 %v346
  %v386 = vunpack.c.l.b16 %v347
  %v387 = vunpack.c.l.b16 %v348
  %v388 = vunpack.c.l.b16 %v349
  %v389 = vunpack.c.l.b16 %v350
  %v390 = vunpack.c.l.b16 %v351
  %v391 = vunpack.c.l.b16 %v352
  %v392 = vunpack.c.l.b16 %v353
  %v393 = vunpack.c.l.b16 %v354
  %v394 = vunpack.c.l.b16 %v355
  %v395 = vunpack.c.l.b16 %v356
  %v396 = vpack.c.b16 %v381, %v380
  %v397 = vpack.c.b16 %v383, %v382
  %v398 = vpack.c.b16 %v385, %v384
  %v399 = vpack.c.b16 %v387, %v386
  %v400 = vpack.c.b16 %v389, %v388
  %v401 = vpack.c.b16 %v391, %v390
  %v402 = vpack.c.b16 %v393, %v392
  %v403 = vpack.c.b16 %v395, %v394
  %412 = vmatprep.subr.bf16.mxu0 0
  %413 = vmatpush1.bf16.msra.mxu0 %v396
  %414 = vmatprep.subr.bf16.mxu0 0
  %415 = vmatpush1.bf16.msra.mxu0 %v397
  %416 = vmatprep.subr.bf16.mxu0 0
  %417 = vmatpush1.bf16.msra.mxu0 %v398
  %418 = vmatprep.subr.bf16.mxu0 0
  %419 = vmatpush1.bf16.msra.mxu0 %v399
  %420 = vmatprep.subr.bf16.mxu0 0
  %421 = vmatpush1.bf16.msra.mxu0 %v400
  %422 = vmatprep.subr.bf16.mxu0 0
  %423 = vmatpush1.bf16.msra.mxu0 %v401
  %424 = vmatprep.subr.bf16.mxu0 0
  %425 = vmatpush1.bf16.msra.mxu0 %v402
  %426 = vmatprep.subr.bf16.mxu0 0
  %427 = vmatpush1.bf16.msra.mxu0 %v403
  %428 = vmatprep.subr.bf16.mxu0 0
  %429 = vmatpush1.bf16.msra.mxu0 0
  %430 = vmatprep.subr.bf16.mxu0 0
  %431 = vmatpush1.bf16.msra.mxu0 0
  %432 = vmatprep.subr.bf16.mxu0 0
  %433 = vmatpush1.bf16.msra.mxu0 0
  %434 = vmatprep.subr.bf16.mxu0 0
  %435 = vmatpush1.bf16.msra.mxu0 0
  %436 = vmatprep.subr.bf16.mxu0 0
  %437 = vmatpush1.bf16.msra.mxu0 0
  %438 = vmatprep.subr.bf16.mxu0 0
  %439 = vmatpush1.bf16.msra.mxu0 0
  %440 = vmatprep.subr.bf16.mxu0 0
  %441 = vmatpush1.bf16.msra.mxu0 0
  %442 = vmatprep.subr.bf16.mxu0 0
  %443 = vmatpush1.bf16.msra.mxu0 0
  %444 = vmatprep.mubr.bf16.mxu0 0
  %445 = vmatmul.mubr.bf16.gmra.mrb[0].mxu0 %v328
  %v446 = vpop.f32.mrb[0].mxu0
  %v447 = vadd.f32 %v362, %v446
  %v448 = vpop.f32.mrb[0].mxu0
  %v449 = vpop.f32.mrb[0].mxu0
  %v450 = vadd.f32 %v362, %v449
  %v451 = vpop.f32.mrb[0].mxu0
  %452 = vmatprep.mubr.bf16.mxu0 0
  %453 = vmatmul.mubr.bf16.gmra.mrb[0].mxu0 %v329
  %v454 = vpop.f32.mrb[0].mxu0
  %v455 = vadd.f32 %v362, %v454
  %v456 = vpop.f32.mrb[0].mxu0
  %v457 = vpop.f32.mrb[0].mxu0
  %v458 = vadd.f32 %v362, %v457
  %v459 = vpop.f32.mrb[0].mxu0
  %460 = vmatprep.mubr.bf16.mxu0 0
  %461 = vmatmul.mubr.bf16.gmra.mrb[0].mxu0 %v330
  %v462 = vpop.f32.mrb[0].mxu0
  %v463 = vadd.f32 %v362, %v462
  %v464 = vpop.f32.mrb[0].mxu0
  %v465 = vpop.f32.mrb[0].mxu0
  %v466 = vadd.f32 %v362, %v465
  %v467 = vpop.f32.mrb[0].mxu0
  %468 = vmatprep.mubr.bf16.mxu0 0
  %469 = vmatmul.mubr.bf16.gmra.mrb[0].mxu0 %v331
  %v470 = vpop.f32.mrb[0].mxu0
  %v471 = vadd.f32 %v362, %v470
  %v472 = vpop.f32.mrb[0].mxu0
  %v473 = vpop.f32.mrb[0].mxu0
  %v474 = vadd.f32 %v362, %v473
  %v475 = vpop.f32.mrb[0].mxu0
  %476 = vmatprep.mubr.bf16.mxu0 0
  %477 = vmatmul.mubr.bf16.gmra.mrb[0].mxu0 %v332
  %v478 = vpop.f32.mrb[0].mxu0
  %v479 = vadd.f32 %v362, %v478
  %v480 = vpop.f32.mrb[0].mxu0
  %v481 = vpop.f32.mrb[0].mxu0
  %v482 = vadd.f32 %v362, %v481
  %v483 = vpop.f32.mrb[0].mxu0
  %484 = vmatprep.mubr.bf16.mxu0 0
  %485 = vmatmul.mubr.bf16.gmra.mrb[0].mxu0 %v333
  %v486 = vpop.f32.mrb[0].mxu0
  %v487 = vadd.f32 %v362, %v486
  %v488 = vpop.f32.mrb[0].mxu0
  %v489 = vpop.f32.mrb[0].mxu0
  %v490 = vadd.f32 %v362, %v489
  %v491 = vpop.f32.mrb[0].mxu0
  %492 = vmatprep.mubr.bf16.mxu0 0
  %493 = vmatmul.mubr.bf16.gmra.mrb[0].mxu0 %v334
  %v494 = vpop.f32.mrb[0].mxu0
  %v495 = vadd.f32 %v362, %v494
  %v496 = vpop.f32.mrb[0].mxu0
  %v497 = vpop.f32.mrb[0].mxu0
  %v498 = vadd.f32 %v362, %v497
  %v499 = vpop.f32.mrb[0].mxu0
  %500 = vmatprep.mubr.bf16.mxu0 0
  %501 = vmatmul.mubr.bf16.gmra.mrb[0].mxu0 %v335
  %v502 = vpop.f32.mrb[0].mxu0
  %v503 = vadd.f32 %v362, %v502
  %v504 = vpop.f32.mrb[0].mxu0
  %v505 = vpop.f32.mrb[0].mxu0
  %v506 = vadd.f32 %v362, %v505
  %v507 = vpop.f32.mrb[0].mxu0
  %508 = vmatprep.mubr.bf16.mxu0 0
  %509 = vmatmul.mubr.bf16.gmra.mrb[0].mxu0 %v336
  %v510 = vpop.f32.mrb[0].mxu0
  %v511 = vadd.f32 %v362, %v510
  %v512 = vpop.f32.mrb[0].mxu0
  %v513 = vpop.f32.mrb[0].mxu0
  %v514 = vadd.f32 %v362, %v513
  %v515 = vpop.f32.mrb[0].mxu0
  %516 = vmatprep.mubr.bf16.mxu0 0
  %517 = vmatmul.mubr.bf16.gmra.mrb[0].mxu0 %v337
  %v518 = vpop.f32.mrb[0].mxu0
  %v519 = vadd.f32 %v362, %v518
  %v520 = vpop.f32.mrb[0].mxu0
  %v521 = vpop.f32.mrb[0].mxu0
  %v522 = vadd.f32 %v362, %v521
  %v523 = vpop.f32.mrb[0].mxu0
  %524 = vmatprep.mubr.bf16.mxu0 0
  %525 = vmatmul.mubr.bf16.gmra.mrb[0].mxu0 %v338
  %v526 = vpop.f32.mrb[0].mxu0
  %v527 = vadd.f32 %v362, %v526
  %v528 = vpop.f32.mrb[0].mxu0
  %v529 = vpop.f32.mrb[0].mxu0
  %v530 = vadd.f32 %v362, %v529
  %v531 = vpop.f32.mrb[0].mxu0
  %532 = vmatprep.mubr.bf16.mxu0 0
  %533 = vmatmul.mubr.bf16.gmra.mrb[0].mxu0 %v339
  %v534 = vpop.f32.mrb[0].mxu0
  %v535 = vadd.f32 %v362, %v534
  %v536 = vpop.f32.mrb[0].mxu0
  %v537 = vpop.f32.mrb[0].mxu0
  %v538 = vadd.f32 %v362, %v537
  %v539 = vpop.f32.mrb[0].mxu0
  %540 = vmatprep.mubr.bf16.mxu0 0
  %541 = vmatmul.mubr.bf16.gmra.mrb[0].mxu0 %v340
  %v542 = vpop.f32.mrb[0].mxu0
  %v543 = vadd.f32 %v362, %v542
  %v544 = vpop.f32.mrb[0].mxu0
  %v545 = vpop.f32.mrb[0].mxu0
  %v546 = vpop.f32.mrb[0].mxu0
  %547 = vdwg.mxu0
  %v548 = vmax.f32 %v447, 0.0
  %v549 = vmax.f32 %v450, 0.0
  %v550 = vmax.f32 %v455, 0.0
  %v551 = vmax.f32 %v458, 0.0
  %v552 = vmax.f32 %v463, 0.0
  %v553 = vmax.f32 %v466, 0.0
  %v554 = vmax.f32 %v471, 0.0
  %v555 = vmax.f32 %v474, 0.0
  %v556 = vmax.f32 %v479, 0.0
  %v557 = vmax.f32 %v482, 0.0
  %v558 = vmax.f32 %v487, 0.0
  %v559 = vmax.f32 %v490, 0.0
  %v560 = vmax.f32 %v495, 0.0
  %v561 = vmax.f32 %v498, 0.0
  %v562 = vmax.f32 %v503, 0.0
  %v563 = vmax.f32 %v506, 0.0
  %v564 = vmax.f32 %v511, 0.0
  %v565 = vmax.f32 %v514, 0.0
  %v566 = vmax.f32 %v519, 0.0
  %v567 = vmax.f32 %v522, 0.0
  %v568 = vmax.f32 %v527, 0.0
  %v569 = vmax.f32 %v530, 0.0
  %v570 = vmax.f32 %v535, 0.0
  %v571 = vmax.f32 %v538, 0.0
  %v572 = vmax.f32 %v543, 0.0
  %v573 = vpack.c.bf16 %v549, %v548
  %v574 = vpack.c.bf16 %v551, %v550
  %v575 = vpack.c.bf16 %v553, %v552
  %v576 = vpack.c.bf16 %v555, %v554
  %v577 = vpack.c.bf16 %v557, %v556
  %v578 = vpack.c.bf16 %v559, %v558
  %v579 = vpack.c.bf16 %v561, %v560
  %v580 = vpack.c.bf16 %v563, %v562
  %v581 = vpack.c.bf16 %v565, %v564
  %v582 = vpack.c.bf16 %v567, %v566
  %v583 = vpack.c.bf16 %v569, %v568
  %v584 = vpack.c.bf16 %v571, %v570
  %v585 = vpack.c.bf16 %v572, %v572
  %v586 = vld [vmem:[%s5] sm:$0xf]
  %v587 = vld [vmem:[%s5 + $0x4] sm:$0xf]
  %v588 = vld [vmem:[%s5 + $0x8] sm:$0xf]
  %v589 = vld [vmem:[%s5 + $0xc] sm:$0xf]
  %v590 = vld [vmem:[%s5 + $0x10] sm:$0xf]
  %v591 = vld [vmem:[%s5 + $0x14] sm:$0xf]
  %v592 = vld [vmem:[%s5 + $0x18] sm:$0xf]
  %v593 = vld [vmem:[%s5 + $0x1c] sm:$0xf]
  %v594 = vld [vmem:[%s5 + $0x20] sm:$0xf]
  %v595 = vld [vmem:[%s5 + $0x24] sm:$0xf]
  %v596 = vld [vmem:[%s5 + $0x28] sm:$0xf]
  %v597 = vld [vmem:[%s5 + $0x2c] sm:$0xf]
  %v598 = vld [vmem:[%s5 + $0x30] sm:$0xf]
  %v599 = vld [vmem:[%s5 + $0x34] sm:$0xf]
  %v600 = vld [vmem:[%s5 + $0x38] sm:$0xf]
  %v601 = vld [vmem:[%s5 + $0x3c] sm:$0xf]
  %v602 = vld [vmem:[%s6] sm:$0x1]
  %v604 = vlaneseq
  %v605 = vshrl.u32 %v604, 7
  %v606 = vsub.s32 0, %v605
  %v607 = vrot.slane %v602, %v606
  %v625 = vunpack.c.l.b16 %v586
  %v626 = vunpack.c.l.b16 %v587
  %v627 = vunpack.c.l.b16 %v588
  %v628 = vunpack.c.l.b16 %v589
  %v629 = vunpack.c.l.b16 %v590
  %v630 = vunpack.c.l.b16 %v591
  %v631 = vunpack.c.l.b16 %v592
  %v632 = vunpack.c.l.b16 %v593
  %v633 = vunpack.c.l.b16 %v594
  %v634 = vunpack.c.l.b16 %v595
  %v635 = vunpack.c.l.b16 %v596
  %v636 = vunpack.c.l.b16 %v597
  %v637 = vunpack.c.l.b16 %v598
  %v638 = vunpack.c.l.b16 %v599
  %v639 = vunpack.c.l.b16 %v600
  %v640 = vunpack.c.l.b16 %v601
  %v641 = vpack.c.b16 %v626, %v625
  %v642 = vpack.c.b16 %v628, %v627
  %v643 = vpack.c.b16 %v630, %v629
  %v644 = vpack.c.b16 %v632, %v631
  %v645 = vpack.c.b16 %v634, %v633
  %v646 = vpack.c.b16 %v636, %v635
  %v647 = vpack.c.b16 %v638, %v637
  %v648 = vpack.c.b16 %v640, %v639
  %657 = vmatprep.subr.bf16.mxu0 0
  %658 = vmatpush1.bf16.msra.mxu0 %v641
  %659 = vmatprep.subr.bf16.mxu0 0
  %660 = vmatpush1.bf16.msra.mxu0 %v642
  %661 = vmatprep.subr.bf16.mxu0 0
  %662 = vmatpush1.bf16.msra.mxu0 %v643
  %663 = vmatprep.subr.bf16.mxu0 0
  %664 = vmatpush1.bf16.msra.mxu0 %v644
  %665 = vmatprep.subr.bf16.mxu0 0
  %666 = vmatpush1.bf16.msra.mxu0 %v645
  %667 = vmatprep.subr.bf16.mxu0 0
  %668 = vmatpush1.bf16.msra.mxu0 %v646
  %669 = vmatprep.subr.bf16.mxu0 0
  %670 = vmatpush1.bf16.msra.mxu0 %v647
  %671 = vmatprep.subr.bf16.mxu0 0
  %672 = vmatpush1.bf16.msra.mxu0 %v648
  %673 = vmatprep.subr.bf16.mxu0 0
  %674 = vmatpush1.bf16.msra.mxu0 0
  %675 = vmatprep.subr.bf16.mxu0 0
  %676 = vmatpush1.bf16.msra.mxu0 0
  %677 = vmatprep.subr.bf16.mxu0 0
  %678 = vmatpush1.bf16.msra.mxu0 0
  %679 = vmatprep.subr.bf16.mxu0 0
  %680 = vmatpush1.bf16.msra.mxu0 0
  %681 = vmatprep.subr.bf16.mxu0 0
  %682 = vmatpush1.bf16.msra.mxu0 0
  %683 = vmatprep.subr.bf16.mxu0 0
  %684 = vmatpush1.bf16.msra.mxu0 0
  %685 = vmatprep.subr.bf16.mxu0 0
  %686 = vmatpush1.bf16.msra.mxu0 0
  %687 = vmatprep.subr.bf16.mxu0 0
  %688 = vmatpush1.bf16.msra.mxu0 0
  %689 = vmatprep.mubr.bf16.mxu0 0
  %690 = vmatmul.mubr.bf16.gmra.mrb[0].mxu0 %v573
  %v691 = vpop.f32.mrb[0].mxu0
  %v692 = vadd.f32 %v607, %v691
  %v693 = vpop.f32.mrb[0].mxu0
  %v694 = vpop.f32.mrb[0].mxu0
  %v695 = vadd.f32 %v607, %v694
  %v696 = vpop.f32.mrb[0].mxu0
  %697 = vmatprep.mubr.bf16.mxu0 0
  %698 = vmatmul.mubr.bf16.gmra.mrb[0].mxu0 %v574
  %v699 = vpop.f32.mrb[0].mxu0
  %v700 = vadd.f32 %v607, %v699
  %v701 = vpop.f32.mrb[0].mxu0
  %v702 = vpop.f32.mrb[0].mxu0
  %v703 = vadd.f32 %v607, %v702
  %v704 = vpop.f32.mrb[0].mxu0
  %705 = vmatprep.mubr.bf16.mxu0 0
  %706 = vmatmul.mubr.bf16.gmra.mrb[0].mxu0 %v575
  %v707 = vpop.f32.mrb[0].mxu0
  %v708 = vadd.f32 %v607, %v707
  %v709 = vpop.f32.mrb[0].mxu0
  %v710 = vpop.f32.mrb[0].mxu0
  %v711 = vadd.f32 %v607, %v710
  %v712 = vpop.f32.mrb[0].mxu0
  %713 = vmatprep.mubr.bf16.mxu0 0
  %714 = vmatmul.mubr.bf16.gmra.mrb[0].mxu0 %v576
  %v715 = vpop.f32.mrb[0].mxu0
  %v716 = vadd.f32 %v607, %v715
  %v717 = vpop.f32.mrb[0].mxu0
  %v718 = vpop.f32.mrb[0].mxu0
  %v719 = vadd.f32 %v607, %v718
  %v720 = vpop.f32.mrb[0].mxu0
  %721 = vmatprep.mubr.bf16.mxu0 0
  %722 = vmatmul.mubr.bf16.gmra.mrb[0].mxu0 %v577
  %v723 = vpop.f32.mrb[0].mxu0
  %v724 = vadd.f32 %v607, %v723
  %v725 = vpop.f32.mrb[0].mxu0
  %v726 = vpop.f32.mrb[0].mxu0
  %v727 = vadd.f32 %v607, %v726
  %v728 = vpop.f32.mrb[0].mxu0
  %729 = vmatprep.mubr.bf16.mxu0 0
  %730 = vmatmul.mubr.bf16.gmra.mrb[0].mxu0 %v578
  %v731 = vpop.f32.mrb[0].mxu0
  %v732 = vadd.f32 %v607, %v731
  %v733 = vpop.f32.mrb[0].mxu0
  %v734 = vpop.f32.mrb[0].mxu0
  %v735 = vadd.f32 %v607, %v734
  %v736 = vpop.f32.mrb[0].mxu0
  %737 = vmatprep.mubr.bf16.mxu0 0
  %738 = vmatmul.mubr.bf16.gmra.mrb[0].mxu0 %v579
  %v739 = vpop.f32.mrb[0].mxu0
  %v740 = vadd.f32 %v607, %v739
  %v741 = vpop.f32.mrb[0].mxu0
  %v742 = vpop.f32.mrb[0].mxu0
  %v743 = vadd.f32 %v607, %v742
  %v744 = vpop.f32.mrb[0].mxu0
  %745 = vmatprep.mubr.bf16.mxu0 0
  %746 = vmatmul.mubr.bf16.gmra.mrb[0].mxu0 %v580
  %v747 = vpop.f32.mrb[0].mxu0
  %v748 = vadd.f32 %v607, %v747
  %v749 = vpop.f32.mrb[0].mxu0
  %v750 = vpop.f32.mrb[0].mxu0
  %v751 = vadd.f32 %v607, %v750
  %v752 = vpop.f32.mrb[0].mxu0
  %753 = vmatprep.mubr.bf16.mxu0 0
  %754 = vmatmul.mubr.bf16.gmra.mrb[0].mxu0 %v581
  %v755 = vpop.f32.mrb[0].mxu0
  %v756 = vadd.f32 %v607, %v755
  %v757 = vpop.f32.mrb[0].mxu0
  %v758 = vpop.f32.mrb[0].mxu0
  %v759 = vadd.f32 %v607, %v758
  %v760 = vpop.f32.mrb[0].mxu0
  %761 = vmatprep.mubr.bf16.mxu0 0
  %762 = vmatmul.mubr.bf16.gmra.mrb[0].mxu0 %v582
  %v763 = vpop.f32.mrb[0].mxu0
  %v764 = vadd.f32 %v607, %v763
  %v765 = vpop.f32.mrb[0].mxu0
  %v766 = vpop.f32.mrb[0].mxu0
  %v767 = vadd.f32 %v607, %v766
  %v768 = vpop.f32.mrb[0].mxu0
  %769 = vmatprep.mubr.bf16.mxu0 0
  %770 = vmatmul.mubr.bf16.gmra.mrb[0].mxu0 %v583
  %v771 = vpop.f32.mrb[0].mxu0
  %v772 = vadd.f32 %v607, %v771
  %v773 = vpop.f32.mrb[0].mxu0
  %v774 = vpop.f32.mrb[0].mxu0
  %v775 = vadd.f32 %v607, %v774
  %v776 = vpop.f32.mrb[0].mxu0
  %777 = vmatprep.mubr.bf16.mxu0 0
  %778 = vmatmul.mubr.bf16.gmra.mrb[0].mxu0 %v584
  %v779 = vpop.f32.mrb[0].mxu0
  %v780 = vadd.f32 %v607, %v779
  %v781 = vpop.f32.mrb[0].mxu0
  %v782 = vpop.f32.mrb[0].mxu0
  %v783 = vadd.f32 %v607, %v782
  %v784 = vpop.f32.mrb[0].mxu0
  %785 = vmatprep.mubr.bf16.mxu0 0
  %786 = vmatmul.mubr.bf16.gmra.mrb[0].mxu0 %v585
  %v787 = vpop.f32.mrb[0].mxu0
  %v788 = vadd.f32 %v607, %v787
  %v789 = vpop.f32.mrb[0].mxu0
  %v790 = vpop.f32.mrb[0].mxu0
  %v791 = vpop.f32.mrb[0].mxu0
  %792 = vdwg.mxu0
  %793 = vst.msk [vmem:[%s7] sm:$0xff] %vm123, %v692
  %794 = vst.msk [vmem:[%s7 + $0x8] sm:$0xff] %vm123, %v695
  %795 = vst.msk [vmem:[%s7 + $0x10] sm:$0xff] %vm123, %v700
  %796 = vst.msk [vmem:[%s7 + $0x18] sm:$0xff] %vm123, %v703
  %797 = vst.msk [vmem:[%s7 + $0x20] sm:$0xff] %vm123, %v708
  %798 = vst.msk [vmem:[%s7 + $0x28] sm:$0xff] %vm123, %v711
  %799 = vst.msk [vmem:[%s7 + $0x30] sm:$0xff] %vm123, %v716
  %800 = vst.msk [vmem:[%s7 + $0x38] sm:$0xff] %vm123, %v719
  %801 = vst.msk [vmem:[%s7 + $0x40] sm:$0xff] %vm123, %v724
  %802 = vst.msk [vmem:[%s7 + $0x48] sm:$0xff] %vm123, %v727
  %803 = vst.msk [vmem:[%s7 + $0x50] sm:$0xff] %vm123, %v732
  %804 = vst.msk [vmem:[%s7 + $0x58] sm:$0xff] %vm123, %v735
  %805 = vst.msk [vmem:[%s7 + $0x60] sm:$0xff] %vm123, %v740
  %806 = vst.msk [vmem:[%s7 + $0x68] sm:$0xff] %vm123, %v743
  %807 = vst.msk [vmem:[%s7 + $0x70] sm:$0xff] %vm123, %v748
  %808 = vst.msk [vmem:[%s7 + $0x78] sm:$0xff] %vm123, %v751
  %809 = vst.msk [vmem:[%s7 + $0x80] sm:$0xff] %vm123, %v756
  %810 = vst.msk [vmem:[%s7 + $0x88] sm:$0xff] %vm123, %v759
  %811 = vst.msk [vmem:[%s7 + $0x90] sm:$0xff] %vm123, %v764
  %812 = vst.msk [vmem:[%s7 + $0x98] sm:$0xff] %vm123, %v767
  %813 = vst.msk [vmem:[%s7 + $0xa0] sm:$0xff] %vm123, %v772
  %814 = vst.msk [vmem:[%s7 + $0xa8] sm:$0xff] %vm123, %v775
  %815 = vst.msk [vmem:[%s7 + $0xb0] sm:$0xff] %vm123, %v780
  %816 = vst.msk [vmem:[%s7 + $0xb8] sm:$0xff] %vm123, %v783
  %817 = vst.msk [vmem:[%s7 + $0xc0] sm:$0xff] %vm123, %v788
  // Predicated region
  $region30: #{neural_network_forward.1} parent=0 // pred_check
    _
  $region31: #{neural_network_forward.1} parent=0 // pred_check_branch
    %819 = sbr.rel (0) target = $region33
  $region32: #{neural_network_forward.1} parent=0 // pred_region
    _
  $region33: #{neural_network_forward.1} parent=0 // pred_fallthru
    _
  // Predicated region
  $region34: #{neural_network_forward.1} parent=0 // pred_check
    _
  $region35: #{neural_network_forward.1} parent=0 // pred_check_branch
    %821 = sbr.rel (0) target = $region37
  $region36: #{neural_network_forward.1} parent=0 // pred_region
    _
  $region37: #{neural_network_forward.1} parent=0 // pred_fallthru
    _

</llo_original>
